<compile_context>
chip_gen: v6e
topology: v6e:2x2x1
jax: 0.10.0
libtpu: 0.0.40
codegen_flags: <defaults>
</compile_context>

<pallas_src>
import math

import jax
import jax.numpy as jnp
from jax.experimental import pallas as pl
from jax.experimental.pallas import tpu as pltpu

_LOG_2PI = math.log(2.0 * math.pi)


def _gaussian_core_sum_kernel(mean_ref, log_std_ref, tgt_ref, sum_ref, acc_ref):
    """Accumulate sum(log_std + 0.5*(y-mean)^2*exp(-2*log_std)) for one chunk.

    mean_ref, log_std_ref, tgt_ref : VMEM [B, R, 128]
    sum_ref                        : SMEM [1, 1]  (partial sum for this parallel chunk)
    acc_ref                        : VMEM [B, R, 128] f32 accumulator (grid-resident)
    """
    i = pl.program_id(1)

    @pl.when(i == 0)
    def _():
        acc_ref[...] = jnp.zeros_like(acc_ref)

    mean = mean_ref[...].astype(jnp.float32)
    log_std = log_std_ref[...].astype(jnp.float32)
    diff = tgt_ref[...].astype(jnp.float32) - mean
    # core NLL term (constant 0.5*log(2*pi) added in the wrapper).
    acc_ref[...] += log_std + 0.5 * (diff * diff) * jnp.exp(-2.0 * log_std)

    @pl.when(i == pl.num_programs(1) - 1)
    def _():
        sum_ref[0, 0] = jnp.sum(acc_ref[...])


def _round_up(x, m):
    return ((x + m - 1) // m) * m


def _choose_tiling(B, T, tile_t_max):
    """Pick (padded_T, tile_t, n_parallel_chunks, inner_steps)."""
    LANE = 128
    MIN_TILE = 8 * LANE  # 1024 -> second-minor block dim is a multiple of 8
    # VMEM budget: (3 inputs x 2 pipeline buffers + 1 f32 accumulator) * B * tile * 4 B.
    # 12 MiB keeps us well inside default scoped VMEM on v5e/v6e and v7x's 64 MiB.
    budget_bytes = 12 * 1024 * 1024
    budget_tile = max(MIN_TILE, budget_bytes // (28 * B))
    tile_cap = max(MIN_TILE, min(int(tile_t_max), budget_tile))
    tile_cap = (tile_cap // MIN_TILE) * MIN_TILE

    Tp0 = _round_up(T, LANE)
    if Tp0 <= tile_cap:
        # Single reduction step: block row-dim equals the full (reshaped) row dim.
        return Tp0, Tp0, 1, 1

    tile = tile_cap
    n_parallel = 2 if Tp0 >= 2 * tile else 1  # feed both TensorCores on v7x
    Tp = _round_up(Tp0, tile * n_parallel)
    inner = (Tp // tile) // n_parallel
    return Tp, tile, n_parallel, inner


def gaussian_loss_pallas(inp, target, size_average=True, tile_t=4096):
    """Pallas equivalent of GaussianLoss().forward(input, target, size_average)."""
    B, C, T = inp.shape
    assert C == 2, "input must have 2 channels: (mean, log_std)"
    tgt = target.reshape(B, T)

    Tp, tile, n_par, inner = _choose_tiling(B, T, tile_t)
    R = tile // 128
    rows_total = Tp // 128

    if Tp != T:
        pad = Tp - T
        # Zero padding contributes exactly 0 to the accumulated core term:
        # log_std=0, diff=0 -> 0 + 0.5*0*exp(0) = 0. No masking required.
        inp_p = jnp.pad(inp, ((0, 0), (0, 0), (0, pad)))
        tgt_p = jnp.pad(tgt, ((0, 0), (0, pad)))
    else:
        inp_p, tgt_p = inp, tgt

    # Free (contiguous) reshapes: lane-dense blocks, no size-2 sublane dim.
    inp4 = inp_p.reshape(B, 2, rows_total, 128)
    tgt3 = tgt_p.reshape(B, rows_total, 128)

    def mean_map(p, i):
        return (0, 0, p * inner + i, 0)

    def log_std_map(p, i):
        return (0, 1, p * inner + i, 0)

    def tgt_map(p, i):
        return (0, p * inner + i, 0)

    itemsize = int(jnp.dtype(inp.dtype).itemsize)
    partials = pl.pallas_call(
        _gaussian_core_sum_kernel,
        out_shape=jax.ShapeDtypeStruct((n_par, 1), jnp.float32),
        grid_spec=pltpu.PrefetchScalarGridSpec(
            num_scalar_prefetch=0,
            grid=(n_par, inner),
            in_specs=[
                # Two squeezed views of the same HBM array: mean / log_std.
                pl.BlockSpec((B, pl.Squeezed(), R, 128), mean_map),
                pl.BlockSpec((B, pl.Squeezed(), R, 128), log_std_map),
                pl.BlockSpec((B, R, 128), tgt_map),
            ],
            out_specs=pl.BlockSpec((1, 1), lambda p, i: (p, 0),
                                   memory_space=pltpu.SMEM),
            scratch_shapes=[pltpu.VMEM((B, R, 128), jnp.float32)],
        ),
        compiler_params=pltpu.CompilerParams(
            dimension_semantics=("parallel", "arbitrary"),
            vmem_limit_bytes=32 * 1024 * 1024,
        ),
        cost_estimate=pl.CostEstimate(
            flops=int(7 * B * T),
            transcendentals=int(B * T),
            bytes_accessed=int(3 * B * T * itemsize),
        ),
    )(inp4, inp4, tgt3)

    total_core = jnp.sum(partials)  # padded elements contributed exactly 0

    if size_average:
        # losses.mean() = 0.5*log(2*pi) + sum(core) / (B*T)
        return jnp.float32(0.5 * _LOG_2PI) + total_core / jnp.float32(B * T)
    else:
        # losses.mean(1).sum(0) = 0.5*log(2*pi)*B + sum(core) / T
        return jnp.float32(0.5 * _LOG_2PI * B) + total_core / jnp.float32(T)


def _gaussian_loss_ref(inp, target, size_average=True):
    """Pure-JAX reference (mirrors the PyTorch semantics)."""
    mean = inp[:, 0, :]
    log_std = inp[:, 1, :]
    y = target.reshape(mean.shape)
    losses = 0.5 * (_LOG_2PI + 2.0 * log_std
                    + jnp.square(y - mean) * jnp.exp(-2.0 * log_std))  # [B, T]
    if size_average:
        return losses.mean()
    return losses.mean(1).sum(0)


if __name__ == "__main__":
    key = jax.random.PRNGKey(0)

    cases = [
        (4, 256, 4096),   # single-tile path (block row-dim == full row dim)
        (2, 4096, 1024),  # multi-tile path: grid (2 parallel chunks, 2 reduction steps)
        (3, 300, 4096),   # T not a multiple of 128 -> zero-padded tail
    ]

    for idx, (B, T, tile_t) in enumerate(cases):
        k1, k2 = jax.random.split(jax.random.fold_in(key, idx))
        x = jax.random.normal(k1, (B, 2, T), dtype=jnp.float32) * 0.5
        y = jax.random.normal(k2, (B, 1, T), dtype=jnp.float32)
        for size_average in (True, False):
            out = jax.block_until_ready(
                gaussian_loss_pallas(x, y, size_average=size_average, tile_t=tile_t))
            ref = _gaussian_loss_ref(x, y, size_average=size_average)
            assert jnp.allclose(out, ref, rtol=1e-5, atol=1e-5), (
                B, T, size_average, out, ref)

    print("KERNEL_OK")
</pallas_src>

<mosaic_0001>
module attributes {stable_mosaic.version = 11 : i64} {
  func.func @_gaussian_core_sum_kernel(%arg0: i32, %arg1: i32, %arg2: memref<4x1x2x128xf32, #tpu.memory_space<vmem>>, %arg3: memref<4x1x2x128xf32, #tpu.memory_space<vmem>>, %arg4: memref<4x2x128xf32, #tpu.memory_space<vmem>>, %arg5: memref<1x1xf32, #tpu.memory_space<smem>>, %arg6: memref<4x2x128xf32, #tpu.memory_space<vmem>>) attributes {dimension_semantics = [#tpu.dimension_semantics<parallel>, #tpu.dimension_semantics<arbitrary>], iteration_bounds = array<i64: 1, 1>, scalar_prefetch = 0 : i64, scratch_operands = 1 : i64, tpu.core_type = #tpu.core_type<tc>, window_params = [{transform_indices = @transform_0, window_bounds = array<i64: 4, 1, 2, 128>}, {transform_indices = @transform_1, window_bounds = array<i64: 4, 1, 2, 128>}, {transform_indices = @transform_2, window_bounds = array<i64: 4, 2, 128>}, {transform_indices = @transform_3, window_bounds = array<i64: 1, 1>}]} {
    %c0_i32 = arith.constant 0 : i32
    %0 = arith.cmpi eq, %arg1, %c0_i32 : i32
    %1 = arith.extui %0 : i1 to i32
    %c0_i32_0 = arith.constant 0 : i32
    %2 = arith.cmpi ne, %1, %c0_i32_0 : i32
    scf.if %2 {
      %cst_20 = arith.constant 0.000000e+00 : f32
      %23 = vector.broadcast %cst_20 : f32 to vector<4x2x128xf32>
      %c0_21 = arith.constant 0 : index
      %c0_22 = arith.constant 0 : index
      %c0_23 = arith.constant 0 : index
      %24 = vector.load %arg6[%c0_21, %c0_22, %c0_23] : memref<4x2x128xf32, #tpu.memory_space<vmem>>, vector<4x2x128xf32>
      tpu.vector_store %arg6[%c0_21, %c0_22, %c0_23], %23 {strides = array<i32>} : memref<4x2x128xf32, #tpu.memory_space<vmem>>, vector<4x2x128xf32>,
    } else {
    }
    %c0 = arith.constant 0 : index
    %c0_1 = arith.constant 0 : index
    %c0_2 = arith.constant 0 : index
    %c0_3 = arith.constant 0 : index
    %3 = vector.load %arg2[%c0, %c0_1, %c0_2, %c0_3] : memref<4x1x2x128xf32, #tpu.memory_space<vmem>>, vector<4x1x2x128xf32>
    %4 = vector.shape_cast %3 : vector<4x1x2x128xf32> to vector<4x2x128xf32>
    %c0_4 = arith.constant 0 : index
    %c0_5 = arith.constant 0 : index
    %c0_6 = arith.constant 0 : index
    %c0_7 = arith.constant 0 : index
    %5 = vector.load %arg3[%c0_4, %c0_5, %c0_6, %c0_7] : memref<4x1x2x128xf32, #tpu.memory_space<vmem>>, vector<4x1x2x128xf32>
    %6 = vector.shape_cast %5 : vector<4x1x2x128xf32> to vector<4x2x128xf32>
    %c0_8 = arith.constant 0 : index
    %c0_9 = arith.constant 0 : index
    %c0_10 = arith.constant 0 : index
    %7 = vector.load %arg4[%c0_8, %c0_9, %c0_10] : memref<4x2x128xf32, #tpu.memory_space<vmem>>, vector<4x2x128xf32>
    %8 = arith.subf %7, %4 : vector<4x2x128xf32>
    %c0_11 = arith.constant 0 : index
    %c0_12 = arith.constant 0 : index
    %c0_13 = arith.constant 0 : index
    %9 = vector.load %arg6[%c0_11, %c0_12, %c0_13] : memref<4x2x128xf32, #tpu.memory_space<vmem>>, vector<4x2x128xf32>
    %10 = arith.mulf %8, %8 : vector<4x2x128xf32>
    %cst = arith.constant 5.000000e-01 : f32
    %11 = vector.broadcast %cst : f32 to vector<4x2x128xf32>
    %12 = arith.mulf %11, %10 : vector<4x2x128xf32>
    %cst_14 = arith.constant -2.000000e+00 : f32
    %13 = vector.broadcast %cst_14 : f32 to vector<4x2x128xf32>
    %14 = arith.mulf %13, %6 : vector<4x2x128xf32>
    %15 = math.exp %14 : vector<4x2x128xf32>
    %16 = arith.mulf %12, %15 : vector<4x2x128xf32>
    %17 = arith.addf %6, %16 : vector<4x2x128xf32>
    %18 = arith.addf %9, %17 : vector<4x2x128xf32>
    %c0_15 = arith.constant 0 : index
    %c0_16 = arith.constant 0 : index
    %c0_17 = arith.constant 0 : index
    %19 = vector.load %arg6[%c0_15, %c0_16, %c0_17] : memref<4x2x128xf32, #tpu.memory_space<vmem>>, vector<4x2x128xf32>
    tpu.vector_store %arg6[%c0_15, %c0_16, %c0_17], %18 {strides = array<i32>} : memref<4x2x128xf32, #tpu.memory_space<vmem>>, vector<4x2x128xf32>,
    %c0_i32_18 = arith.constant 0 : i32
    %20 = arith.cmpi eq, %arg1, %c0_i32_18 : i32
    %21 = arith.extui %20 : i1 to i32
    %c0_i32_19 = arith.constant 0 : i32
    %22 = arith.cmpi ne, %21, %c0_i32_19 : i32
    scf.if %22 {
      %c0_20 = arith.constant 0 : index
      %c0_21 = arith.constant 0 : index
      %c0_22 = arith.constant 0 : index
      %23 = vector.load %arg6[%c0_20, %c0_21, %c0_22] : memref<4x2x128xf32, #tpu.memory_space<vmem>>, vector<4x2x128xf32>
      %24 = vector.shape_cast %23 : vector<4x2x128xf32> to vector<1x4x2x128xf32>
      %cst_23 = arith.constant dense<0.000000e+00> : vector<1xf32>
      %25 = vector.multi_reduction <add>, %24, %cst_23 [1, 2, 3] : vector<1x4x2x128xf32> to vector<1xf32>
      %26 = vector.shape_cast %25 : vector<1xf32> to vector<1x1x1x1xf32>
      %27 = vector.extract %26[0, 0, 0, 0] : f32 from vector<1x1x1x1xf32>
      %c0_24 = arith.constant 0 : index
      %c0_25 = arith.constant 0 : index
      %28 = memref.load %arg5[%c0_24, %c0_25] : memref<1x1xf32, #tpu.memory_space<smem>>
      memref.store %27, %arg5[%c0_24, %c0_25] : memref<1x1xf32, #tpu.memory_space<smem>>
    } else {
    }
    return
  }
  func.func @transform_0(%arg0: i32, %arg1: i32) -> (i32, i32, i32, i32) {
    %c1_i32 = arith.constant 1 : i32
    %0 = arith.muli %arg0, %c1_i32 : i32
    %1 = arith.addi %0, %arg1 : i32
    %c0_i32 = arith.constant 0 : i32
    %c0_i32_0 = arith.constant 0 : i32
    %c0_i32_1 = arith.constant 0 : i32
    %c0_i32_2 = arith.constant 0 : i32
    return %c0_i32, %c0_i32_0, %1, %c0_i32_1 : i32, i32, i32, i32
  }
  func.func @transform_1(%arg0: i32, %arg1: i32) -> (i32, i32, i32, i32) {
    %c1_i32 = arith.constant 1 : i32
    %0 = arith.muli %arg0, %c1_i32 : i32
    %1 = arith.addi %0, %arg1 : i32
    %c0_i32 = arith.constant 0 : i32
    %c1_i32_0 = arith.constant 1 : i32
    %c0_i32_1 = arith.constant 0 : i32
    %c0_i32_2 = arith.constant 0 : i32
    return %c0_i32, %c1_i32_0, %1, %c0_i32_1 : i32, i32, i32, i32
  }
  func.func @transform_2(%arg0: i32, %arg1: i32) -> (i32, i32, i32) {
    %c1_i32 = arith.constant 1 : i32
    %0 = arith.muli %arg0, %c1_i32 : i32
    %1 = arith.addi %0, %arg1 : i32
    %c0_i32 = arith.constant 0 : i32
    %c0_i32_0 = arith.constant 0 : i32
    %c0_i32_1 = arith.constant 0 : i32
    return %c0_i32, %1, %c0_i32_0 : i32, i32, i32
  }
  func.func @transform_3(%arg0: i32, %arg1: i32) -> (i32, i32) {
    %c0_i32 = arith.constant 0 : i32
    %c0_i32_0 = arith.constant 0 : i32
    return %arg0, %c0_i32 : i32, i32
  }
}

</mosaic_0001>

<llo_original>
// kernel: tpu_custom_call.1
$region0: #{tpu_custom_call.1}
  #allocation0 [shape = 'u32[]', space=smem, size = 0x4, offset = 0x4, fixed_abs, tag = 'smem constant byte address 0x4 - core index']
  #allocation1 [shape = 'u32[144,128]{1,0:T(1,128)}', space=vmem, size = 0x12000, scoped, tag = 'internal scratch']
  #allocation2 [shape = 'f32[4,2,128]{2,1,0:T(2,128)}', space=vmem, size = 0x1000, scoped, tag = 'scratch operand']
  %s0 = inlined_call_operand.hbm [shape: f32[4,2,2,128], index: 0, kind: input, shape index: {}]
  %s1 = inlined_call_operand.hbm [shape: f32[4,2,2,128], index: 1, kind: input, shape index: {}]
  %s2 = inlined_call_operand.hbm [shape: f32[4,2,128], index: 2, kind: input, shape index: {}]
  %s3 = inlined_call_operand.hbm [shape: f32[1,1], index: 3, kind: output, shape index: {}]
  %s4 = sld [smem:[#allocation0]]
  $region42: #{tpu_custom_call.1} parent=0
    _
  %s6 = ssub.s32 1, %s4
  %s7 = scalar_select 0, %s6, %s4
  $region1: #{tpu_custom_call.1} parent=0
    #allocation3 [shape = 'u8[4096]{0}', space=vmem, size = 0x1000, scoped, tag = 'input window, operand 0, single buffered']
    #allocation4 [shape = 's32[1]{0}', space=sflag, size = 0x4, scoped, tag = 'scoped memory for tpu_custom_call.1']
    #allocation5 [shape = 's32[1]{0}', space=sflag, size = 0x4, scoped, tag = 'scoped memory for tpu_custom_call.1']
    #allocation6 [shape = 'u8[4096]{0}', space=vmem, size = 0x1000, scoped, tag = 'input window, operand 1, single buffered']
    #allocation7 [shape = 's32[1]{0}', space=sflag, size = 0x4, scoped, tag = 'scoped memory for tpu_custom_call.1']
    #allocation8 [shape = 'u8[4096]{0}', space=vmem, size = 0x1000, scoped, tag = 'input window, operand 2, single buffered']
    #allocation9 [shape = 'u8[512]{0}', space=smem, size = 0x200, scoped, tag = 'output window, operand 0, single buffered']
    %8 = vsyncpa [#allocation4], 0
    %9 = vsyncpa [#allocation7], 0
    %10 = vsyncpa [#allocation5], 0
    // Predicated region
    $region2: #{tpu_custom_call.1} parent=1 // pred_check
      _
    $region3: #{tpu_custom_call.1} parent=1 // pred_check_branch
      %12 = sbr.rel (0) target = $region5
    $region4: #{tpu_custom_call.1} parent=1 // pred_region
      %s13 = sadd.s32 0, 0
      %s15 = ssub.s32 128, 128
      %16 = vsyncadd [#allocation4], %s15
      %s17 = smul.addr %s13, 32
      %s18 = scalar_lea.hbm %s0, %s17
      %s19 = sshll.u32 [#allocation3], 4
      %s20 = int_to_ptr.vmem [resolvable:$true] %s19
      %25 = dma.hbm_to_vmem [thread:$0]  %s18, 128, %s20, [#allocation4], 64, 32, 2
    $region5: #{tpu_custom_call.1} parent=1 // pred_fallthru
      _
    // Predicated region
    $region6: #{tpu_custom_call.1} parent=1 // pred_check
      _
    $region7: #{tpu_custom_call.1} parent=1 // pred_check_branch
      %27 = sbr.rel (0) target = $region9
    $region8: #{tpu_custom_call.1} parent=1 // pred_region
      %s28 = sadd.s32 0, 0
      %s30 = ssub.s32 128, 128
      %31 = vsyncadd [#allocation7], %s30
      %s32 = sadd.s32 %s28, 1
      %s33 = smul.addr %s32, 32
      %s34 = scalar_lea.hbm %s1, %s33
      %s35 = sshll.u32 [#allocation6], 4
      %s36 = int_to_ptr.vmem [resolvable:$true] %s35
      %41 = dma.hbm_to_vmem [thread:$0]  %s34, 128, %s36, [#allocation7], 64, 32, 2
    $region9: #{tpu_custom_call.1} parent=1 // pred_fallthru
      _
    // Predicated region
    $region10: #{tpu_custom_call.1} parent=1 // pred_check
      _
    $region11: #{tpu_custom_call.1} parent=1 // pred_check_branch
      %43 = sbr.rel (0) target = $region13
    $region12: #{tpu_custom_call.1} parent=1 // pred_region
      %s44 = sadd.s32 0, 0
      %s46 = ssub.s32 128, 128
      %47 = vsyncadd [#allocation7], %s46
      %s48 = smul.addr %s44, 32
      %s49 = scalar_lea.hbm %s2, %s48
      %s50 = sshll.u32 [#allocation8], 4
      %s51 = int_to_ptr.vmem [resolvable:$true] %s50
      %56 = dma.hbm_to_vmem [thread:$0]  %s49, 128, %s51, [#allocation7], 32, 32, 2
    $region13: #{tpu_custom_call.1} parent=1 // pred_fallthru
      _
    // Predicated region
    $region14: #{tpu_custom_call.1} parent=1 // pred_check
      _
    $region15: #{tpu_custom_call.1} parent=1 // pred_check_branch
      %58 = sbr.rel (0) target = $region17
    $region16: #{tpu_custom_call.1} parent=1 // pred_region
      %59 = dma.done [#allocation4], 128
    $region17: #{tpu_custom_call.1} parent=1 // pred_fallthru
      _
    // Predicated region
    $region18: #{tpu_custom_call.1} parent=1 // pred_check
      _
    $region19: #{tpu_custom_call.1} parent=1 // pred_check_branch
      %61 = sbr.rel (0) target = $region21
    $region20: #{tpu_custom_call.1} parent=1 // pred_region
      %62 = dma.done [#allocation7], 128
    $region21: #{tpu_custom_call.1} parent=1 // pred_fallthru
      _
    // Predicated region
    $region22: #{tpu_custom_call.1} parent=1 // pred_check
      _
    $region23: #{tpu_custom_call.1} parent=1 // pred_check_branch
      %64 = sbr.rel (0) target = $region25
    $region24: #{tpu_custom_call.1} parent=1 // pred_region
      %65 = dma.done [#allocation7], 128
    $region25: #{tpu_custom_call.1} parent=1 // pred_fallthru
      _
    %s66 = sadd.s32 0, 0
    %s67 = sadd.s32 0, 0
    %s68 = sadd.s32 0, 0
    %p69 = scmp.eq.s32.totalorder 0, 0
    // Predicated region
    $region26: #{tpu_custom_call.1} parent=1 // pred_check
      %p70 = pneg %p69
    $region27: #{tpu_custom_call.1} parent=1 // pred_check_branch
      %72 = sbr.rel (%p70) target = $region29
    $region28: #{tpu_custom_call.1} parent=1 // pred_region
      %73 = vst [vmem:[#allocation2] sm:$0x3] 0.0
      %74 = vst [vmem:[#allocation2 + $0x2] sm:$0x3] 0.0
      %75 = vst [vmem:[#allocation2 + $0x4] sm:$0x3] 0.0
      %76 = vst [vmem:[#allocation2 + $0x6] sm:$0x3] 0.0
    $region29: #{tpu_custom_call.1} parent=1 // pred_fallthru
      _
    %v77 = vld [vmem:[#allocation3] sm:$0x3]
    %v78 = vld [vmem:[#allocation3 + $0x2] sm:$0x3]
    %v79 = vld [vmem:[#allocation3 + $0x4] sm:$0x3]
    %v80 = vld [vmem:[#allocation3 + $0x6] sm:$0x3]
    %v81 = vld [vmem:[#allocation6] sm:$0x3]
    %v82 = vld [vmem:[#allocation6 + $0x2] sm:$0x3]
    %v83 = vld [vmem:[#allocation6 + $0x4] sm:$0x3]
    %v84 = vld [vmem:[#allocation6 + $0x6] sm:$0x3]
    %v85 = vld [vmem:[#allocation8] sm:$0x3]
    %v86 = vld [vmem:[#allocation8 + $0x2] sm:$0x3]
    %v87 = vld [vmem:[#allocation8 + $0x4] sm:$0x3]
    %v88 = vld [vmem:[#allocation8 + $0x6] sm:$0x3]
    %v89 = vsub.f32 %v85, %v77
    %v90 = vsub.f32 %v86, %v78
    %v91 = vsub.f32 %v87, %v79
    %v92 = vsub.f32 %v88, %v80
    %v93 = vld [vmem:[#allocation2] sm:$0x3]
    %v94 = vld [vmem:[#allocation2 + $0x2] sm:$0x3]
    %v95 = vld [vmem:[#allocation2 + $0x4] sm:$0x3]
    %v96 = vld [vmem:[#allocation2 + $0x6] sm:$0x3]
    %v97 = vmul.f32 %v89, %v89
    %v98 = vmul.f32 %v90, %v90
    %v99 = vmul.f32 %v91, %v91
    %v100 = vmul.f32 %v92, %v92
    %v101 = vmul.f32 %v97, 0.5
    %v102 = vmul.f32 %v98, 0.5
    %v103 = vmul.f32 %v99, 0.5
    %v104 = vmul.f32 %v100, 0.5
    %v105 = vmul.f32 %v81, -2.0
    %v106 = vmul.f32 %v82, -2.0
    %v107 = vmul.f32 %v83, -2.0
    %v108 = vmul.f32 %v84, -2.0
    %v109 = vmul.f32 %v105, 1.442695
    %v110 = vpow.pop %v109
    %v111 = vmul.f32 %v106, 1.442695
    %v112 = vpow.pop %v111
    %v113 = vmul.f32 %v107, 1.442695
    %v114 = vpow.pop %v113
    %v115 = vmul.f32 %v108, 1.442695
    %v116 = vpow.pop %v115
    %v117 = vmul.f32 %v101, %v110
    %v118 = vmul.f32 %v102, %v112
    %v119 = vmul.f32 %v103, %v114
    %v120 = vmul.f32 %v104, %v116
    %v121 = vadd.f32 %v81, %v117
    %v122 = vadd.f32 %v82, %v118
    %v123 = vadd.f32 %v83, %v119
    %v124 = vadd.f32 %v84, %v120
    %v125 = vadd.f32 %v93, %v121
    %v126 = vadd.f32 %v94, %v122
    %v127 = vadd.f32 %v95, %v123
    %v128 = vadd.f32 %v96, %v124
    %129 = vst [vmem:[#allocation2] sm:$0x3] %v125
    %130 = vst [vmem:[#allocation2 + $0x2] sm:$0x3] %v126
    %131 = vst [vmem:[#allocation2 + $0x4] sm:$0x3] %v127
    %132 = vst [vmem:[#allocation2 + $0x6] sm:$0x3] %v128
    // Predicated region
    $region30: #{tpu_custom_call.1} parent=1 // pred_check
      %p133 = pneg %p69
    $region31: #{tpu_custom_call.1} parent=1 // pred_check_branch
      %135 = sbr.rel (%p133) target = $region33
    $region32: #{tpu_custom_call.1} parent=1 // pred_region
      %v136 = vld [vmem:[#allocation2] sm:$0x3]
      %v137 = vld [vmem:[#allocation2 + $0x2] sm:$0x3]
      %v138 = vld [vmem:[#allocation2 + $0x4] sm:$0x3]
      %v139 = vld [vmem:[#allocation2 + $0x6] sm:$0x3]
      %vm140 = vcmask 1041408
      %v141 = vsel %vm140, %v136, 0.0
      %v142 = vsel %vm140, %v137, 0.0
      %v143 = vadd.f32 %v141, %v142
      %v144 = vsel %vm140, %v138, 0.0
      %v145 = vadd.f32 %v143, %v144
      %v146 = vsel %vm140, %v139, 0.0
      %v147 = vadd.f32 %v145, %v146
      %148 = vadd.xlane.f32.xlu0 %v147
      %v149 = vpop.xlane.xlu0 %148
      %v150 = vrot.slane %v149, 4
      %v151 = vadd.f32 %v149, %v150
      %v152 = vrot.slane %v151, 2
      %v153 = vadd.f32 %v151, %v152
      %v154 = vrot.slane %v153, 1
      %v155 = vadd.f32 %v153, %v154
      %s156 = vtos %v155
      %s157 = scalar_lea.smem [#allocation9], 0
      %158 = sst [smem:[%s157]] %s156
    $region33: #{tpu_custom_call.1} parent=1 // pred_fallthru
      _
    // Predicated region
    $region34: #{tpu_custom_call.1} parent=1 // pred_check
      _
    $region35: #{tpu_custom_call.1} parent=1 // pred_check_branch
      %160 = sbr.rel (0) target = $region37
    $region36: #{tpu_custom_call.1} parent=1 // pred_region
      %s162 = ssub.s32 16, 16
      %163 = vsyncadd [#allocation5], %s162
      %166 = dma.smem_to_hbm [#allocation9], 16, %s3, [#allocation5]
    $region37: #{tpu_custom_call.1} parent=1 // pred_fallthru
      _
    // Predicated region
    $region38: #{tpu_custom_call.1} parent=1 // pred_check
      _
    $region39: #{tpu_custom_call.1} parent=1 // pred_check_branch
      %168 = sbr.rel (0) target = $region41
    $region40: #{tpu_custom_call.1} parent=1 // pred_region
      %169 = dma.done [#allocation5], 16
    $region41: #{tpu_custom_call.1} parent=1 // pred_fallthru
      _
    %170 = sfence
    %171 = vsyncpa [#allocation4], 1
    %172 = vsyncpa [#allocation7], 1
    %173 = vsyncpa [#allocation5], 1

</llo_original>
